<compile_context>
chip_gen: v5e
topology: v5e:2x2
jax: 0.10.0
libtpu: 0.0.40
codegen_flags: <defaults>
</compile_context>

<pallas_src>
import math

import jax
import jax.numpy as jnp
from jax.experimental import pallas as pl
from jax.experimental.pallas import tpu as pltpu


def _copy_kernel(x_ref, o_ref):
    # Pure streaming copy of a lane-dense tile; the flatten already happened
    # (for free) in the wrapper reshape.
    o_ref[...] = x_ref[...]


def _round_up(v, m):
    return ((v + m - 1) // m) * m


def _choose_slab_view(n_elems, b, f, sub_unit):
    """Pick an (R, L) re-view of the contiguous data with L a multiple of 128.

    Prefers an L (<= 4096) for which R = N // L is also a multiple of the
    dtype's sublane unit (fully dense vregs).  Falls back to the plain (B, F)
    view when N has no multiple-of-128 divisor; the cdiv grid then masks the
    lane-edge block, which is safe for a copy.
    """
    lane_cap = 4096
    candidates = [
        L for L in range(128, min(n_elems, lane_cap) + 1, 128) if n_elems % L == 0
    ]
    if candidates:
        dense = [L for L in candidates if (n_elems // L) % sub_unit == 0]
        L = max(dense) if dense else max(candidates)
        return n_elems // L, L
    return b, f


def flatten_layer(x, *, alias_input=True):
    """Pallas equivalent of FlattenLayer.forward: (B, *dims) -> (B, prod(dims)).

    Set `alias_input=True` (default) and donate `x` at the jit boundary to let
    XLA reuse the input buffer for the output (and possibly elide the copy).
    """
    B = x.shape[0]
    F = int(math.prod(x.shape[1:]))
    N = B * F
    if N == 0:
        return jnp.reshape(x, (B, F))

    itemsize = jnp.dtype(x.dtype).itemsize
    # dtype-aware sublane packing unit: 8 (32-bit), 16 (16-bit), 32 (8-bit).
    sub_unit = max(8, 32 // max(itemsize, 1))

    R, C = _choose_slab_view(N, B, F, sub_unit)
    # Metadata-only re-view: kernel sees a contiguous, lane-dense (R, C) slab.
    slab = x.reshape(R, C)

    # Lane tile: full slab width when it fits the 4096 cap, else a 4096-lane
    # tile (multiple of 128) with a masked edge block.
    tile_c = min(_round_up(C, 128), 4096)

    # Row tile: as many sublane-unit rows as keep one block around ~6 MiB, so
    # 2 buffers x (in + out) x block stays ~24 MiB on every generation.
    block_bytes_cap = 6 * 1024 * 1024
    max_rows = max(
        sub_unit,
        (block_bytes_cap // (tile_c * itemsize)) // sub_unit * sub_unit,
    )
    tile_r = min(max_rows, _round_up(R, sub_unit))

    grid = (pl.cdiv(R, tile_r), pl.cdiv(C, tile_c))

    out2d = pl.pallas_call(
        _copy_kernel,
        out_shape=jax.ShapeDtypeStruct((R, C), x.dtype),
        grid_spec=pltpu.PrefetchScalarGridSpec(
            num_scalar_prefetch=0,
            grid=grid,
            in_specs=[pl.BlockSpec((tile_r, tile_c), lambda i, j: (i, j))],
            out_specs=pl.BlockSpec((tile_r, tile_c), lambda i, j: (i, j)),
        ),
        compiler_params=pltpu.CompilerParams(
            # Fully independent tiles: both axes can shard across TensorCores.
            dimension_semantics=("parallel", "parallel"),
            # Explicit scoped-VMEM budget: lifts v5e's 16 MiB default, keeps
            # comfortable headroom under v7x's 64 MiB physical VMEM.
            vmem_limit_bytes=48 * 1024 * 1024,
        ),
        # Pure memory op: 0 flops, read + write of the whole slab.
        cost_estimate=pl.CostEstimate(
            flops=0, transcendentals=0, bytes_accessed=2 * N * itemsize
        ),
        input_output_aliases={0: 0} if alias_input else {},
    )(slab)

    # Metadata-only re-view back to the module's output shape.
    return out2d.reshape(B, F)
    # TODO(synk): in production, flatten of a contiguous array should simply be
    # `x.reshape(B, -1)` (zero HBM traffic) or be fused into the consumer's
    # BlockSpec/index_map; this standalone copy exists only to satisfy the
    # "express it as a Pallas kernel" requirement.


if __name__ == "__main__":
    key = jax.random.PRNGKey(0)
    B, C, H, W = 2, 4, 16, 16
    x = jax.random.normal(key, (B, C, H, W), dtype=jnp.float32)

    out = flatten_layer(x)
    jax.block_until_ready(out)

    # Correctness check against the pure-JAX reference (== torch .view(B, -1)).
    ref = x.reshape(B, -1)
    assert out.shape == (B, C * H * W), out.shape
    assert out.dtype == x.dtype
    assert jnp.array_equal(out, ref), "flatten mismatch"

    print("KERNEL_OK")
</pallas_src>

<mosaic_0001>
module attributes {stable_mosaic.version = 11 : i64} {
  func.func @_copy_kernel(%arg0: i32, %arg1: i32, %arg2: memref<8x256xf32, #tpu.memory_space<vmem>>, %arg3: memref<8x256xf32, #tpu.memory_space<vmem>>) attributes {dimension_semantics = [#tpu.dimension_semantics<parallel>, #tpu.dimension_semantics<parallel>], iteration_bounds = array<i64: 1, 1>, scalar_prefetch = 0 : i64, scratch_operands = 0 : i64, tpu.core_type = #tpu.core_type<tc>, window_params = [{transform_indices = @transform_0, window_bounds = array<i64: 8, 256>}, {transform_indices = @transform_1, window_bounds = array<i64: 8, 256>}]} {
    %c0 = arith.constant 0 : index
    %c0_0 = arith.constant 0 : index
    %0 = vector.load %arg2[%c0, %c0_0] : memref<8x256xf32, #tpu.memory_space<vmem>>, vector<8x256xf32>
    %c0_1 = arith.constant 0 : index
    %c0_2 = arith.constant 0 : index
    %1 = vector.load %arg3[%c0_1, %c0_2] : memref<8x256xf32, #tpu.memory_space<vmem>>, vector<8x256xf32>
    tpu.vector_store %arg3[%c0_1, %c0_2], %0 {strides = array<i32>} : memref<8x256xf32, #tpu.memory_space<vmem>>, vector<8x256xf32>,
    return
  }
  func.func @transform_0(%arg0: i32, %arg1: i32) -> (i32, i32) {
    %c0_i32 = arith.constant 0 : i32
    return %arg0, %arg1 : i32, i32
  }
  func.func @transform_1(%arg0: i32, %arg1: i32) -> (i32, i32) {
    %c0_i32 = arith.constant 0 : i32
    return %arg0, %arg1 : i32, i32
  }
}

</mosaic_0001>

<llo_original>
// kernel: tpu_custom_call.1
$region0: #{tpu_custom_call.1}
  #allocation0 [shape = 'u32[]', space=smem, size = 0x4, offset = 0x4, fixed_abs, tag = 'smem constant byte address 0x4 - core index']
  #allocation1 [shape = 'u32[72,128]{1,0:T(1,128)}', space=vmem, size = 0x9000, scoped, tag = 'internal scratch']
  %s0 = inlined_call_operand.hbm [shape: f32[8,256], index: 0, kind: input, shape index: {}, may-alias: {0,1}]
  %s1 = inlined_call_operand.hbm [shape: f32[8,256], index: 1, kind: output, shape index: {}, may-alias: {0,1}]
  %s2 = sld [smem:[#allocation0]]
  $region18: #{tpu_custom_call.1} parent=0
    _
  %s4 = ssub.s32 1, %s2
  %s5 = scalar_select 0, %s4, %s2
  $region1: #{tpu_custom_call.1} parent=0
    #allocation2 [shape = 'u8[8192]{0}', space=vmem, size = 0x2000, scoped, tag = 'input window, operand 0, single buffered']
    #allocation3 [shape = 's32[1]{0}', space=sflag, size = 0x4, scoped, tag = 'scoped memory for tpu_custom_call.1']
    #allocation4 [shape = 's32[1]{0}', space=sflag, size = 0x4, scoped, tag = 'scoped memory for tpu_custom_call.1']
    #allocation5 [shape = 'u8[8192]{0}', space=vmem, size = 0x2000, scoped, tag = 'output window, operand 0, single buffered']
    %6 = vsyncpa [#allocation3], 0
    %7 = vsyncpa [#allocation4], 0
    // Predicated region
    $region2: #{tpu_custom_call.1} parent=1 // pred_check
      _
    $region3: #{tpu_custom_call.1} parent=1 // pred_check_branch
      %9 = sbr.rel (0) target = $region5
    $region4: #{tpu_custom_call.1} parent=1 // pred_region
      %11 = vsyncadd [#allocation3], 0
      %s13 = sshll.u32 %s0, 4
      %s14 = int_to_ptr.hbm [resolvable:$true] %s13
      %s15 = sshll.u32 [#allocation2], 4
      %s16 = int_to_ptr.vmem [resolvable:$true] %s15
      %18 = dma.hbm_to_vmem [thread:$0]  %s14, 256, %s16, [#allocation3]
    $region5: #{tpu_custom_call.1} parent=1 // pred_fallthru
      _
    // Predicated region
    $region6: #{tpu_custom_call.1} parent=1 // pred_check
      _
    $region7: #{tpu_custom_call.1} parent=1 // pred_check_branch
      %20 = sbr.rel (0) target = $region9
    $region8: #{tpu_custom_call.1} parent=1 // pred_region
      %22 = dma.done [#allocation3], 256
    $region9: #{tpu_custom_call.1} parent=1 // pred_fallthru
      _
    %v23 = vld [vmem:[#allocation2] sm:$0xff]
    %v24 = vld [vmem:[#allocation2 + $0x8] sm:$0xff]
    %25 = vst [vmem:[#allocation5] sm:$0xff] %v23
    %26 = vst [vmem:[#allocation5 + $0x8] sm:$0xff] %v24
    // Predicated region
    $region10: #{tpu_custom_call.1} parent=1 // pred_check
      _
    $region11: #{tpu_custom_call.1} parent=1 // pred_check_branch
      %28 = sbr.rel (0) target = $region13
    $region12: #{tpu_custom_call.1} parent=1 // pred_region
      %30 = vsyncadd [#allocation4], 0
      %s32 = sshll.u32 [#allocation5], 4
      %s33 = int_to_ptr.vmem [resolvable:$true] %s32
      %s34 = sshll.u32 %s1, 4
      %s35 = int_to_ptr.hbm [resolvable:$true] %s34
      %37 = dma.vmem_to_hbm [thread:$0]  %s33, 256, %s35, [#allocation4]
    $region13: #{tpu_custom_call.1} parent=1 // pred_fallthru
      _
    // Predicated region
    $region14: #{tpu_custom_call.1} parent=1 // pred_check
      _
    $region15: #{tpu_custom_call.1} parent=1 // pred_check_branch
      %39 = sbr.rel (0) target = $region17
    $region16: #{tpu_custom_call.1} parent=1 // pred_region
      %41 = dma.done [#allocation4], 256
    $region17: #{tpu_custom_call.1} parent=1 // pred_fallthru
      _
    %42 = vsyncpa [#allocation3], 1
    %43 = vsyncpa [#allocation4], 1

</llo_original>
